<compile_context>
chip_gen: v7x
topology: tpu7x:2x2x1
jax: 0.10.0
libtpu: 0.0.40
codegen_flags: <defaults>
</compile_context>

<pallas_src>
import functools

import jax
import jax.numpy as jnp
from jax.experimental import pallas as pl
from jax.experimental.pallas import tpu as pltpu

HID_SIZE = 64
DEFAULT_BLOCK_B = 4096   # max batch rows per grid step (sweepable; 2K-8K amortizes step overhead)


def _round_up(n, m):
    return ((n + m - 1) // m) * m


def _critic_kernel(x_ref, w1_ref, b1_ref, w2_ref, b2_ref, w3_ref, b3_ref, out_ref):
    # Layer 1: Linear + ReLU.  f32 matmul on the MXU (HBM-bound kernel -> extra passes
    # are free), f32 bias-add + ReLU on the VPU (v5e has no bf16 VALU).
    x = x_ref[...]
    h1 = jnp.dot(x, w1_ref[...], preferred_element_type=jnp.float32)
    h1 = jnp.maximum(h1 + b1_ref[...], 0.0)

    # Layer 2: Linear + ReLU.
    h2 = jnp.dot(h1, w2_ref[...], preferred_element_type=jnp.float32)
    h2 = jnp.maximum(h2 + b2_ref[...], 0.0)

    # Output head: Linear(64 -> 1).  Narrow (tb, 1) store: only real bytes reach HBM;
    # the handful of masked stores per tile is negligible vs the HBM-byte savings.
    v = jnp.dot(h2, w3_ref[...], preferred_element_type=jnp.float32)
    out_ref[...] = v + b3_ref[0, 0]


def init_params(key, obs_size):
    """Deterministic synthetic parameter init (shapes match the nn.Linear layers)."""
    k1, k2, k3, k4, k5, k6 = jax.random.split(key, 6)

    def uinit(k, shape, fan_in):
        bound = 1.0 / jnp.sqrt(fan_in)
        return jax.random.uniform(k, shape, jnp.float32, -bound, bound)

    return {
        # stored as (in, out) == PyTorch weight.T
        "w1": uinit(k1, (obs_size, HID_SIZE), obs_size),
        "b1": uinit(k2, (1, HID_SIZE), obs_size),
        "w2": uinit(k3, (HID_SIZE, HID_SIZE), HID_SIZE),
        "b2": uinit(k4, (1, HID_SIZE), HID_SIZE),
        "w3": uinit(k5, (HID_SIZE, 1), HID_SIZE),
        "b3": uinit(k6, (1, 1), HID_SIZE),
    }


@functools.partial(jax.jit, static_argnames=("block_b",))
def model_critic_forward(x, params, block_b=DEFAULT_BLOCK_B):
    """Fused ModelCritic forward.

    x:      (B, obs_size) float32
    params: dict from init_params (weights as (in, out), biases as (1, out), b3 as (1, 1))
    returns (B, 1) float32
    """
    B, obs = x.shape

    # Pick the number of grid steps / batch tile.  Shapes are static at trace time.
    n_steps = max(1, pl.cdiv(B, block_b))
    if B >= 2048:
        n_steps = max(n_steps, 2)          # v7x megacore: give both TensorCores work
    tb = _round_up(pl.cdiv(B, n_steps), 8)  # sublane-aligned batch tile
    b_pad = n_steps * tb

    # Pad only the batch axis, and only when necessary (padded rows are sliced away).
    x_in = x if b_pad == B else jnp.pad(x, ((0, b_pad - B), (0, 0)))

    flops = 2 * b_pad * (obs * HID_SIZE + HID_SIZE * HID_SIZE + HID_SIZE * 1)
    bytes_accessed = (
        b_pad * obs * 4                       # x read
        + b_pad * 1 * 4                       # value write
        + sum(int(v.size) * v.dtype.itemsize for v in params.values())
    )
    cost = pl.CostEstimate(flops=flops, transcendentals=0, bytes_accessed=bytes_accessed)

    out = pl.pallas_call(
        _critic_kernel,
        out_shape=jax.ShapeDtypeStruct((b_pad, 1), jnp.float32),
        grid=(n_steps,),
        in_specs=[
            pl.BlockSpec((tb, obs), lambda i: (i, 0)),             # x tile (pipelined)
            pl.BlockSpec((obs, HID_SIZE), lambda i: (0, 0)),       # w1 (resident)
            pl.BlockSpec((1, HID_SIZE), lambda i: (0, 0)),         # b1 (resident)
            pl.BlockSpec((HID_SIZE, HID_SIZE), lambda i: (0, 0)),  # w2 (resident)
            pl.BlockSpec((1, HID_SIZE), lambda i: (0, 0)),         # b2 (resident)
            pl.BlockSpec((HID_SIZE, 1), lambda i: (0, 0)),         # w3 (resident)
            pl.BlockSpec(memory_space=pltpu.MemorySpace.SMEM),     # b3 scalar
        ],
        out_specs=pl.BlockSpec((tb, 1), lambda i: (i, 0)),         # narrow value column
        compiler_params=pltpu.CompilerParams(
            dimension_semantics=("parallel",),                     # megacore on v7x
            vmem_limit_bytes=32 * 1024 * 1024,
        ),
        cost_estimate=cost,
    )(x_in, params["w1"], params["b1"], params["w2"], params["b2"],
      params["w3"], params["b3"])

    return out if b_pad == B else out[:B]


def reference_forward(x, params):
    """Pure-JAX f32 reference (matches the PyTorch module exactly)."""
    h1 = jnp.maximum(x @ params["w1"] + params["b1"], 0.0)
    h2 = jnp.maximum(h1 @ params["w2"] + params["b2"], 0.0)
    return h2 @ params["w3"] + params["b3"]


if __name__ == "__main__":
    key = jax.random.PRNGKey(0)
    k_p, k_x, k_x2 = jax.random.split(key, 3)

    OBS_SIZE = 32
    params = init_params(k_p, OBS_SIZE)

    # Small batch: single grid step.
    B = 8
    x = jax.random.normal(k_x, (B, OBS_SIZE), jnp.float32)
    out = jax.block_until_ready(model_critic_forward(x, params))
    ref = reference_forward(x, params)
    assert out.shape == (B, 1), out.shape
    assert jnp.allclose(out, ref, atol=1e-2, rtol=1e-2), "mismatch vs reference (small batch)"

    # Larger batch: exercises the multi-step pipelined / megacore path (grid >= 2).
    B2 = 4096
    x2 = jax.random.normal(k_x2, (B2, OBS_SIZE), jnp.float32)
    out2 = jax.block_until_ready(model_critic_forward(x2, params))
    ref2 = reference_forward(x2, params)
    assert out2.shape == (B2, 1), out2.shape
    assert jnp.allclose(out2, ref2, atol=1e-2, rtol=1e-2), "mismatch vs reference (large batch)"

    print("KERNEL_OK")
</pallas_src>

<mosaic_0001>
module attributes {stable_mosaic.version = 11 : i64} {
  func.func @_critic_kernel(%arg0: i32, %arg1: memref<8x32xf32, #tpu.memory_space<vmem>>, %arg2: memref<32x64xf32, #tpu.memory_space<vmem>>, %arg3: memref<1x64xf32, #tpu.memory_space<vmem>>, %arg4: memref<64x64xf32, #tpu.memory_space<vmem>>, %arg5: memref<1x64xf32, #tpu.memory_space<vmem>>, %arg6: memref<64x1xf32, #tpu.memory_space<vmem>>, %arg7: memref<1x1xf32, #tpu.memory_space<smem>>, %arg8: memref<8x1xf32, #tpu.memory_space<vmem>>) attributes {dimension_semantics = [#tpu.dimension_semantics<parallel>], iteration_bounds = array<i64: 1>, scalar_prefetch = 0 : i64, scratch_operands = 0 : i64, tpu.core_type = #tpu.core_type<tc>, window_params = [{transform_indices = @transform_0, window_bounds = array<i64: 8, 32>}, {pipeline_mode = #tpu.pipeline_mode<synchronous>, transform_indices = @transform_1, window_bounds = array<i64: 32, 64>}, {pipeline_mode = #tpu.pipeline_mode<synchronous>, transform_indices = @transform_2, window_bounds = array<i64: 1, 64>}, {pipeline_mode = #tpu.pipeline_mode<synchronous>, transform_indices = @transform_3, window_bounds = array<i64: 64, 64>}, {pipeline_mode = #tpu.pipeline_mode<synchronous>, transform_indices = @transform_4, window_bounds = array<i64: 1, 64>}, {pipeline_mode = #tpu.pipeline_mode<synchronous>, transform_indices = @transform_5, window_bounds = array<i64: 64, 1>}, {transform_indices = @transform_6, window_bounds = array<i64: 1, 1>}, {transform_indices = @transform_7, window_bounds = array<i64: 8, 1>}]} {
    %c0 = arith.constant 0 : index
    %c0_0 = arith.constant 0 : index
    %0 = vector.load %arg1[%c0, %c0_0] : memref<8x32xf32, #tpu.memory_space<vmem>>, vector<8x32xf32>
    %c0_1 = arith.constant 0 : index
    %c0_2 = arith.constant 0 : index
    %1 = vector.load %arg2[%c0_1, %c0_2] : memref<32x64xf32, #tpu.memory_space<vmem>>, vector<32x64xf32>
    %cst = arith.constant dense<0.000000e+00> : vector<8x64xf32>
    %2 = tpu.matmul %0, %1, %cst {dimension_numbers = #tpu.dot_dimension_numbers<[1], [0], [0], [1], [0, 0, 1, 1], [], []>} : vector<8x32xf32>, vector<32x64xf32>, vector<8x64xf32> -> vector<8x64xf32>
    %c0_3 = arith.constant 0 : index
    %c0_4 = arith.constant 0 : index
    %3 = vector.load %arg3[%c0_3, %c0_4] : memref<1x64xf32, #tpu.memory_space<vmem>>, vector<1x64xf32>
    %4 = vector.broadcast %3 : vector<1x64xf32> to vector<8x64xf32>
    %5 = arith.addf %2, %4 : vector<8x64xf32>
    %cst_5 = arith.constant 0.000000e+00 : f32
    %6 = vector.broadcast %cst_5 : f32 to vector<8x64xf32>
    %7 = arith.maximumf %5, %6 : vector<8x64xf32>
    %c0_6 = arith.constant 0 : index
    %c0_7 = arith.constant 0 : index
    %8 = vector.load %arg4[%c0_6, %c0_7] : memref<64x64xf32, #tpu.memory_space<vmem>>, vector<64x64xf32>
    %cst_8 = arith.constant dense<0.000000e+00> : vector<8x64xf32>
    %9 = tpu.matmul %7, %8, %cst_8 {dimension_numbers = #tpu.dot_dimension_numbers<[1], [0], [0], [1], [0, 0, 1, 1], [], []>} : vector<8x64xf32>, vector<64x64xf32>, vector<8x64xf32> -> vector<8x64xf32>
    %c0_9 = arith.constant 0 : index
    %c0_10 = arith.constant 0 : index
    %10 = vector.load %arg5[%c0_9, %c0_10] : memref<1x64xf32, #tpu.memory_space<vmem>>, vector<1x64xf32>
    %11 = vector.broadcast %10 : vector<1x64xf32> to vector<8x64xf32>
    %12 = arith.addf %9, %11 : vector<8x64xf32>
    %cst_11 = arith.constant 0.000000e+00 : f32
    %13 = vector.broadcast %cst_11 : f32 to vector<8x64xf32>
    %14 = arith.maximumf %12, %13 : vector<8x64xf32>
    %c0_12 = arith.constant 0 : index
    %c0_13 = arith.constant 0 : index
    %15 = vector.load %arg6[%c0_12, %c0_13] : memref<64x1xf32, #tpu.memory_space<vmem>>, vector<64x1xf32>
    %cst_14 = arith.constant dense<0.000000e+00> : vector<8x1xf32>
    %16 = tpu.matmul %14, %15, %cst_14 {dimension_numbers = #tpu.dot_dimension_numbers<[1], [0], [0], [1], [0, 0, 1, 1], [], []>} : vector<8x64xf32>, vector<64x1xf32>, vector<8x1xf32> -> vector<8x1xf32>
    %c0_15 = arith.constant 0 : index
    %c0_16 = arith.constant 0 : index
    %17 = memref.load %arg7[%c0_15, %c0_16] : memref<1x1xf32, #tpu.memory_space<smem>>
    %18 = vector.broadcast %17 : f32 to vector<8x1xf32>
    %19 = arith.addf %16, %18 : vector<8x1xf32>
    %c0_17 = arith.constant 0 : index
    %c0_18 = arith.constant 0 : index
    %20 = vector.load %arg8[%c0_17, %c0_18] : memref<8x1xf32, #tpu.memory_space<vmem>>, vector<8x1xf32>
    tpu.vector_store %arg8[%c0_17, %c0_18], %19 {strides = array<i32>} : memref<8x1xf32, #tpu.memory_space<vmem>>, vector<8x1xf32>,
    return
  }
  func.func @transform_0(%arg0: i32) -> (i32, i32) {
    %c0_i32 = arith.constant 0 : i32
    %c0_i32_0 = arith.constant 0 : i32
    return %arg0, %c0_i32 : i32, i32
  }
  func.func @transform_1(%arg0: i32) -> (i32, i32) {
    %c0_i32 = arith.constant 0 : i32
    %c0_i32_0 = arith.constant 0 : i32
    %c0_i32_1 = arith.constant 0 : i32
    return %c0_i32, %c0_i32_0 : i32, i32
  }
  func.func @transform_2(%arg0: i32) -> (i32, i32) {
    %c0_i32 = arith.constant 0 : i32
    %c0_i32_0 = arith.constant 0 : i32
    %c0_i32_1 = arith.constant 0 : i32
    return %c0_i32, %c0_i32_0 : i32, i32
  }
  func.func @transform_3(%arg0: i32) -> (i32, i32) {
    %c0_i32 = arith.constant 0 : i32
    %c0_i32_0 = arith.constant 0 : i32
    %c0_i32_1 = arith.constant 0 : i32
    return %c0_i32, %c0_i32_0 : i32, i32
  }
  func.func @transform_4(%arg0: i32) -> (i32, i32) {
    %c0_i32 = arith.constant 0 : i32
    %c0_i32_0 = arith.constant 0 : i32
    %c0_i32_1 = arith.constant 0 : i32
    return %c0_i32, %c0_i32_0 : i32, i32
  }
  func.func @transform_5(%arg0: i32) -> (i32, i32) {
    %c0_i32 = arith.constant 0 : i32
    %c0_i32_0 = arith.constant 0 : i32
    %c0_i32_1 = arith.constant 0 : i32
    return %c0_i32, %c0_i32_0 : i32, i32
  }
  func.func @transform_6(%arg0: i32) -> (i32, i32) {
    %c0_i32 = arith.constant 0 : i32
    %c0_i32_0 = arith.constant 0 : i32
    %c0_i32_1 = arith.constant 0 : i32
    return %c0_i32, %c0_i32_0 : i32, i32
  }
  func.func @transform_7(%arg0: i32) -> (i32, i32) {
    %c0_i32 = arith.constant 0 : i32
    %c0_i32_0 = arith.constant 0 : i32
    return %arg0, %c0_i32 : i32, i32
  }
}

</mosaic_0001>

<llo_original>
// kernel: model_critic_forward.1
$region0: #{model_critic_forward.1}
  #allocation0 [shape = 'u32[]', space=smem, size = 0x4, offset = 0x4, fixed_abs, tag = 'smem constant byte address 0x4 - core index']
  #allocation1 [shape = 'u32[144,128]{1,0:T(1,128)}', space=vmem, size = 0x12000, scoped, tag = 'internal scratch']
  #allocation2 [shape = 'f32[1,1]{1,0:T(1,128)S(6)}', space=smem, size = 0x200, scoped, tag = 'scoped memory for model_critic_forward.1']
  %s0 = inlined_call_operand.vmem [shape: f32[8,32], index: 0, kind: input, shape index: {}]
  %s1 = inlined_call_operand.hbm [shape: f32[32,64], index: 1, kind: input, shape index: {}]
  %s2 = inlined_call_operand.vmem [shape: f32[1,64], index: 2, kind: input, shape index: {}]
  %s3 = inlined_call_operand.vmem [shape: f32[64,64], index: 3, kind: input, shape index: {}]
  %s4 = inlined_call_operand.vmem [shape: f32[1,64], index: 4, kind: input, shape index: {}]
  %s5 = inlined_call_operand.vmem [shape: f32[64,1], index: 5, kind: input, shape index: {}]
  %s6 = inlined_call_operand.<no memory space> [shape: f32[1,1], index: 6, kind: input, shape index: {}]
  %s7 = inlined_call_operand.vmem [shape: f32[8,1], index: 7, kind: output, shape index: {}]
  %s8 = sld [smem:[#allocation0]]
  $region42: #{model_critic_forward.1} parent=0
    _
  %s10 = ssub.s32 1, %s8
  %s11 = scalar_select 0, %s10, %s8
  %12 = sst [smem:[#allocation2]] %s6
  $region1: #{model_critic_forward.1} parent=0
    #allocation3 [shape = 'u8[16384]{0}', space=vmem, size = 0x4000, scoped, tag = 'input window, operand 1, single buffered']
    #allocation4 [shape = 's32[1]{0}', space=sflag, size = 0x4, scoped, tag = 'scoped memory for model_critic_forward.1']
    %13 = vsyncpa [#allocation4], 0
    // Predicated region
    $region2: #{model_critic_forward.1} parent=1 // pred_check
      _
    $region3: #{model_critic_forward.1} parent=1 // pred_check_branch
      %15 = sbr.rel (0) target = $region5
    $region4: #{model_critic_forward.1} parent=1 // pred_region
      _
    $region5: #{model_critic_forward.1} parent=1 // pred_fallthru
      _
    // Predicated region
    $region6: #{model_critic_forward.1} parent=1 // pred_check
      _
    $region7: #{model_critic_forward.1} parent=1 // pred_check_branch
      %17 = sbr.rel (0) target = $region9
    $region8: #{model_critic_forward.1} parent=1 // pred_region
      %s19 = ssub.s32 512, 512
      %20 = vsyncadd [#allocation4], %s19
      %s21 = sshll.u32 [#allocation3], 4
      %s22 = int_to_ptr.vmem [resolvable:$true] %s21
      %27 = dma.hbm_to_vmem [thread:$0]  %s1, 512, %s22, [#allocation4], 128, 128, 8
    $region9: #{model_critic_forward.1} parent=1 // pred_fallthru
      _
    // Predicated region
    $region10: #{model_critic_forward.1} parent=1 // pred_check
      _
    $region11: #{model_critic_forward.1} parent=1 // pred_check_branch
      %29 = sbr.rel (0) target = $region13
    $region12: #{model_critic_forward.1} parent=1 // pred_region
      _
    $region13: #{model_critic_forward.1} parent=1 // pred_fallthru
      _
    // Predicated region
    $region14: #{model_critic_forward.1} parent=1 // pred_check
      _
    $region15: #{model_critic_forward.1} parent=1 // pred_check_branch
      %31 = sbr.rel (0) target = $region17
    $region16: #{model_critic_forward.1} parent=1 // pred_region
      _
    $region17: #{model_critic_forward.1} parent=1 // pred_fallthru
      _
    // Predicated region
    $region18: #{model_critic_forward.1} parent=1 // pred_check
      _
    $region19: #{model_critic_forward.1} parent=1 // pred_check_branch
      %33 = sbr.rel (0) target = $region21
    $region20: #{model_critic_forward.1} parent=1 // pred_region
      _
    $region21: #{model_critic_forward.1} parent=1 // pred_fallthru
      _
    // Predicated region
    $region22: #{model_critic_forward.1} parent=1 // pred_check
      _
    $region23: #{model_critic_forward.1} parent=1 // pred_check_branch
      %35 = sbr.rel (0) target = $region25
    $region24: #{model_critic_forward.1} parent=1 // pred_region
      _
    $region25: #{model_critic_forward.1} parent=1 // pred_fallthru
      _
    // Predicated region
    $region26: #{model_critic_forward.1} parent=1 // pred_check
      _
    $region27: #{model_critic_forward.1} parent=1 // pred_check_branch
      %37 = sbr.rel (0) target = $region29
    $region28: #{model_critic_forward.1} parent=1 // pred_region
      _
    $region29: #{model_critic_forward.1} parent=1 // pred_fallthru
      _
    // Predicated region
    $region30: #{model_critic_forward.1} parent=1 // pred_check
      _
    $region31: #{model_critic_forward.1} parent=1 // pred_check_branch
      %39 = sbr.rel (0) target = $region33
    $region32: #{model_critic_forward.1} parent=1 // pred_region
      %40 = dma.done [#allocation4], 512
    $region33: #{model_critic_forward.1} parent=1 // pred_fallthru
      _
    %v41 = vld [vmem:[%s0] sm:$0xff]
    %v42 = vld [vmem:[#allocation3] sm:$0xff]
    %v43 = vld [vmem:[#allocation3 + $0x8] sm:$0xff]
    %v44 = vld [vmem:[#allocation3 + $0x10] sm:$0xff]
    %v45 = vld [vmem:[#allocation3 + $0x18] sm:$0xff]
    %v46 = vld [vmem:[%s2] sm:$0x1]
    %v48 = vlaneseq
    %v49 = vshrl.u32 %v48, 7
    %v50 = vsub.s32 0, %v49
    %v51 = vrot.slane %v46, %v50
    %vm53 = vcmask 261120
    %v55 = vsel %vm53, %v41, 0
    %57 = vmatprep.subr.mxu0 0.0
    %58 = vmatpush1.msra.mxu0 %v42
    %59 = vmatprep.subr.mxu0 0.0
    %60 = vmatpush1.msra.mxu0 %v43
    %61 = vmatprep.subr.mxu0 0.0
    %62 = vmatpush1.msra.mxu0 %v44
    %63 = vmatprep.subr.mxu0 0.0
    %64 = vmatpush1.msra.mxu0 %v45
    %65 = vmatprep.subr.mxu0 0.0
    %66 = vmatpush1.msra.mxu0 0.0
    %67 = vmatprep.subr.mxu0 0.0
    %68 = vmatpush1.msra.mxu0 0.0
    %69 = vmatprep.subr.mxu0 0.0
    %70 = vmatpush1.msra.mxu0 0.0
    %71 = vmatprep.subr.mxu0 0.0
    %72 = vmatpush1.msra.mxu0 0.0
    %73 = vmatprep.subr.mxu0 0.0
    %74 = vmatpush1.msra.mxu0 0.0
    %75 = vmatprep.subr.mxu0 0.0
    %76 = vmatpush1.msra.mxu0 0.0
    %77 = vmatprep.subr.mxu0 0.0
    %78 = vmatpush1.msra.mxu0 0.0
    %79 = vmatprep.subr.mxu0 0.0
    %80 = vmatpush1.msra.mxu0 0.0
    %81 = vmatprep.subr.mxu0 0.0
    %82 = vmatpush1.msra.mxu0 0.0
    %83 = vmatprep.subr.mxu0 0.0
    %84 = vmatpush1.msra.mxu0 0.0
    %85 = vmatprep.subr.mxu0 0.0
    %86 = vmatpush1.msra.mxu0 0.0
    %87 = vmatprep.subr.mxu0 0.0
    %88 = vmatpush1.msra.mxu0 0.0
    %89 = vmatprep.subr.mxu0 0.0
    %90 = vmatpush1.msra.mxu0 0.0
    %91 = vmatprep.subr.mxu0 0.0
    %92 = vmatpush1.msra.mxu0 0.0
    %93 = vmatprep.subr.mxu0 0.0
    %94 = vmatpush1.msra.mxu0 0.0
    %95 = vmatprep.subr.mxu0 0.0
    %96 = vmatpush1.msra.mxu0 0.0
    %97 = vmatprep.subr.mxu0 0.0
    %98 = vmatpush1.msra.mxu0 0.0
    %99 = vmatprep.subr.mxu0 0.0
    %100 = vmatpush1.msra.mxu0 0.0
    %101 = vmatprep.subr.mxu0 0.0
    %102 = vmatpush1.msra.mxu0 0.0
    %103 = vmatprep.subr.mxu0 0.0
    %104 = vmatpush1.msra.mxu0 0.0
    %105 = vmatprep.subr.mxu0 0.0
    %106 = vmatpush1.msra.mxu0 0.0
    %107 = vmatprep.subr.mxu0 0.0
    %108 = vmatpush1.msra.mxu0 0.0
    %109 = vmatprep.subr.mxu0 0.0
    %110 = vmatpush1.msra.mxu0 0.0
    %111 = vmatprep.subr.mxu0 0.0
    %112 = vmatpush1.msra.mxu0 0.0
    %113 = vmatprep.subr.mxu0 0.0
    %114 = vmatpush1.msra.mxu0 0.0
    %115 = vmatprep.subr.mxu0 0.0
    %116 = vmatpush1.msra.mxu0 0.0
    %117 = vmatprep.subr.mxu0 0.0
    %118 = vmatpush1.msra.mxu0 0.0
    %119 = vmatprep.subr.mxu0 0.0
    %120 = vmatpush1.msra.mxu0 0.0
    %121 = vmatprep.mubr.f32.mxu0 0.0
    %122 = vmatmul.mubr.f32.gmra.mrb[0].mxu0 %v55
    %v123 = vpop.f32.mrb[0].mxu0
    %v124 = vadd.f32 %v51, %v123
    %v125 = vpop.f32.mrb[0].mxu0
    %126 = vdwg.mxu0
    %v127 = vmax.f32 %v124, 0.0
    %v128 = vld [vmem:[%s3] sm:$0xff]
    %v129 = vld [vmem:[%s3 + $0x8] sm:$0xff]
    %v130 = vld [vmem:[%s3 + $0x10] sm:$0xff]
    %v131 = vld [vmem:[%s3 + $0x18] sm:$0xff]
    %v132 = vld [vmem:[%s3 + $0x20] sm:$0xff]
    %v133 = vld [vmem:[%s3 + $0x28] sm:$0xff]
    %v134 = vld [vmem:[%s3 + $0x30] sm:$0xff]
    %v135 = vld [vmem:[%s3 + $0x38] sm:$0xff]
    %v136 = vld [vmem:[%s4] sm:$0x1]
    %v138 = vlaneseq
    %v139 = vshrl.u32 %v138, 7
    %v140 = vsub.s32 0, %v139
    %v141 = vrot.slane %v136, %v140
    %vm143 = vcmask 523264
    %v145 = vsel %vm143, %v127, 0
    %147 = vmatprep.subr.mxu0 0.0
    %148 = vmatpush1.msra.mxu0 %v128
    %149 = vmatprep.subr.mxu0 0.0
    %150 = vmatpush1.msra.mxu0 %v129
    %151 = vmatprep.subr.mxu0 0.0
    %152 = vmatpush1.msra.mxu0 %v130
    %153 = vmatprep.subr.mxu0 0.0
    %154 = vmatpush1.msra.mxu0 %v131
    %155 = vmatprep.subr.mxu0 0.0
    %156 = vmatpush1.msra.mxu0 %v132
    %157 = vmatprep.subr.mxu0 0.0
    %158 = vmatpush1.msra.mxu0 %v133
    %159 = vmatprep.subr.mxu0 0.0
    %160 = vmatpush1.msra.mxu0 %v134
    %161 = vmatprep.subr.mxu0 0.0
    %162 = vmatpush1.msra.mxu0 %v135
    %163 = vmatprep.subr.mxu0 0.0
    %164 = vmatpush1.msra.mxu0 0.0
    %165 = vmatprep.subr.mxu0 0.0
    %166 = vmatpush1.msra.mxu0 0.0
    %167 = vmatprep.subr.mxu0 0.0
    %168 = vmatpush1.msra.mxu0 0.0
    %169 = vmatprep.subr.mxu0 0.0
    %170 = vmatpush1.msra.mxu0 0.0
    %171 = vmatprep.subr.mxu0 0.0
    %172 = vmatpush1.msra.mxu0 0.0
    %173 = vmatprep.subr.mxu0 0.0
    %174 = vmatpush1.msra.mxu0 0.0
    %175 = vmatprep.subr.mxu0 0.0
    %176 = vmatpush1.msra.mxu0 0.0
    %177 = vmatprep.subr.mxu0 0.0
    %178 = vmatpush1.msra.mxu0 0.0
    %179 = vmatprep.subr.mxu0 0.0
    %180 = vmatpush1.msra.mxu0 0.0
    %181 = vmatprep.subr.mxu0 0.0
    %182 = vmatpush1.msra.mxu0 0.0
    %183 = vmatprep.subr.mxu0 0.0
    %184 = vmatpush1.msra.mxu0 0.0
    %185 = vmatprep.subr.mxu0 0.0
    %186 = vmatpush1.msra.mxu0 0.0
    %187 = vmatprep.subr.mxu0 0.0
    %188 = vmatpush1.msra.mxu0 0.0
    %189 = vmatprep.subr.mxu0 0.0
    %190 = vmatpush1.msra.mxu0 0.0
    %191 = vmatprep.subr.mxu0 0.0
    %192 = vmatpush1.msra.mxu0 0.0
    %193 = vmatprep.subr.mxu0 0.0
    %194 = vmatpush1.msra.mxu0 0.0
    %195 = vmatprep.subr.mxu0 0.0
    %196 = vmatpush1.msra.mxu0 0.0
    %197 = vmatprep.subr.mxu0 0.0
    %198 = vmatpush1.msra.mxu0 0.0
    %199 = vmatprep.subr.mxu0 0.0
    %200 = vmatpush1.msra.mxu0 0.0
    %201 = vmatprep.subr.mxu0 0.0
    %202 = vmatpush1.msra.mxu0 0.0
    %203 = vmatprep.subr.mxu0 0.0
    %204 = vmatpush1.msra.mxu0 0.0
    %205 = vmatprep.subr.mxu0 0.0
    %206 = vmatpush1.msra.mxu0 0.0
    %207 = vmatprep.subr.mxu0 0.0
    %208 = vmatpush1.msra.mxu0 0.0
    %209 = vmatprep.subr.mxu0 0.0
    %210 = vmatpush1.msra.mxu0 0.0
    %211 = vmatprep.mubr.f32.mxu0 0.0
    %212 = vmatmul.mubr.f32.gmra.mrb[0].mxu0 %v145
    %v213 = vpop.f32.mrb[0].mxu0
    %v214 = vadd.f32 %v141, %v213
    %v215 = vpop.f32.mrb[0].mxu0
    %216 = vdwg.mxu0
    %v217 = vmax.f32 %v214, 0.0
    %v218 = vld [vmem:[%s5] sm:$0xff]
    %v219 = vld [vmem:[%s5 + $0x8] sm:$0xff]
    %v220 = vld [vmem:[%s5 + $0x10] sm:$0xff]
    %v221 = vld [vmem:[%s5 + $0x18] sm:$0xff]
    %v222 = vld [vmem:[%s5 + $0x20] sm:$0xff]
    %v223 = vld [vmem:[%s5 + $0x28] sm:$0xff]
    %v224 = vld [vmem:[%s5 + $0x30] sm:$0xff]
    %v225 = vld [vmem:[%s5 + $0x38] sm:$0xff]
    %s226 = sld [smem:[#allocation2]]
    %v227 = vstv %s226
    %v229 = vsel %vm143, %v217, 0
    %231 = vmatprep.subr.mxu0 0.0
    %232 = vmatpush1.msra.mxu0 %v218
    %233 = vmatprep.subr.mxu0 0.0
    %234 = vmatpush1.msra.mxu0 %v219
    %235 = vmatprep.subr.mxu0 0.0
    %236 = vmatpush1.msra.mxu0 %v220
    %237 = vmatprep.subr.mxu0 0.0
    %238 = vmatpush1.msra.mxu0 %v221
    %239 = vmatprep.subr.mxu0 0.0
    %240 = vmatpush1.msra.mxu0 %v222
    %241 = vmatprep.subr.mxu0 0.0
    %242 = vmatpush1.msra.mxu0 %v223
    %243 = vmatprep.subr.mxu0 0.0
    %244 = vmatpush1.msra.mxu0 %v224
    %245 = vmatprep.subr.mxu0 0.0
    %246 = vmatpush1.msra.mxu0 %v225
    %247 = vmatprep.subr.mxu0 0.0
    %248 = vmatpush1.msra.mxu0 0.0
    %249 = vmatprep.subr.mxu0 0.0
    %250 = vmatpush1.msra.mxu0 0.0
    %251 = vmatprep.subr.mxu0 0.0
    %252 = vmatpush1.msra.mxu0 0.0
    %253 = vmatprep.subr.mxu0 0.0
    %254 = vmatpush1.msra.mxu0 0.0
    %255 = vmatprep.subr.mxu0 0.0
    %256 = vmatpush1.msra.mxu0 0.0
    %257 = vmatprep.subr.mxu0 0.0
    %258 = vmatpush1.msra.mxu0 0.0
    %259 = vmatprep.subr.mxu0 0.0
    %260 = vmatpush1.msra.mxu0 0.0
    %261 = vmatprep.subr.mxu0 0.0
    %262 = vmatpush1.msra.mxu0 0.0
    %263 = vmatprep.subr.mxu0 0.0
    %264 = vmatpush1.msra.mxu0 0.0
    %265 = vmatprep.subr.mxu0 0.0
    %266 = vmatpush1.msra.mxu0 0.0
    %267 = vmatprep.subr.mxu0 0.0
    %268 = vmatpush1.msra.mxu0 0.0
    %269 = vmatprep.subr.mxu0 0.0
    %270 = vmatpush1.msra.mxu0 0.0
    %271 = vmatprep.subr.mxu0 0.0
    %272 = vmatpush1.msra.mxu0 0.0
    %273 = vmatprep.subr.mxu0 0.0
    %274 = vmatpush1.msra.mxu0 0.0
    %275 = vmatprep.subr.mxu0 0.0
    %276 = vmatpush1.msra.mxu0 0.0
    %277 = vmatprep.subr.mxu0 0.0
    %278 = vmatpush1.msra.mxu0 0.0
    %279 = vmatprep.subr.mxu0 0.0
    %280 = vmatpush1.msra.mxu0 0.0
    %281 = vmatprep.subr.mxu0 0.0
    %282 = vmatpush1.msra.mxu0 0.0
    %283 = vmatprep.subr.mxu0 0.0
    %284 = vmatpush1.msra.mxu0 0.0
    %285 = vmatprep.subr.mxu0 0.0
    %286 = vmatpush1.msra.mxu0 0.0
    %287 = vmatprep.subr.mxu0 0.0
    %288 = vmatpush1.msra.mxu0 0.0
    %289 = vmatprep.subr.mxu0 0.0
    %290 = vmatpush1.msra.mxu0 0.0
    %291 = vmatprep.subr.mxu0 0.0
    %292 = vmatpush1.msra.mxu0 0.0
    %293 = vmatprep.subr.mxu0 0.0
    %294 = vmatpush1.msra.mxu0 0.0
    %295 = vmatprep.mubr.f32.mxu0 0.0
    %296 = vmatmul.mubr.f32.gmra.mrb[0].mxu0 %v229
    %v297 = vpop.f32.mrb[0].mxu0
    %v298 = vadd.f32 %v227, %v297
    %v299 = vpop.f32.mrb[0].mxu0
    %300 = vdwg.mxu0
    %vm301 = vcmask 7168
    %302 = vst.msk [vmem:[%s7] sm:$0xff] %vm301, %v298
    // Predicated region
    $region34: #{model_critic_forward.1} parent=1 // pred_check
      _
    $region35: #{model_critic_forward.1} parent=1 // pred_check_branch
      %304 = sbr.rel (0) target = $region37
    $region36: #{model_critic_forward.1} parent=1 // pred_region
      _
    $region37: #{model_critic_forward.1} parent=1 // pred_fallthru
      _
    // Predicated region
    $region38: #{model_critic_forward.1} parent=1 // pred_check
      _
    $region39: #{model_critic_forward.1} parent=1 // pred_check_branch
      %306 = sbr.rel (0) target = $region41
    $region40: #{model_critic_forward.1} parent=1 // pred_region
      _
    $region41: #{model_critic_forward.1} parent=1 // pred_fallthru
      _
    %307 = vsyncpa [#allocation4], 1

</llo_original>
